<compile_context>
chip_gen: v5e
topology: v5e:2x2
jax: 0.10.0
libtpu: 0.0.40
codegen_flags: <defaults>
</compile_context>

<pallas_src>
import functools

import jax
import jax.numpy as jnp
from jax import lax
from jax.experimental import pallas as pl
from jax.experimental.pallas import tpu as pltpu


def _msst_gcn_kernel(x_ref, p_ref, o_ref, *, off, T, K, B):
    BK = B * K

    def mm(a, b):  # MXU matmul, f32 accumulation
        return jnp.dot(a, b, preferred_element_type=jnp.float32)

    def ld(name, r, c):  # static slice of the packed parameter slab
        o = off[name]
        return p_ref[o:o + r, :c]

    relu = lambda v: jnp.maximum(v, 0.0)

    x = x_ref[...]                                    # (T, B*K) batched windows

    a_t       = ld("a_t", T, T)                       # (T, T)
    blk_as_T  = ld("blk_as_T", BK, BK)                # I_B (x) adj_s^T
    blk_wt1   = ld("blk_wt1", BK, BK)                 # I_B (x) W_t1, zero-padded
    blk_wt2   = ld("blk_wt2", BK, BK)                 # I_B (x) W_t2, zero-padded
    blk_wt3   = ld("blk_wt3", BK, BK)                 # I_B (x) W_t3, zero-padded
    w_s1_T    = ld("w_s1_T", 8, T)                    # (8, T)
    w_s2_T    = ld("w_s2_T", 4, 8)                    # (4, 8)
    w_s3_T    = ld("w_s3_T", T, 4)                    # (T, 4)
    blk_wfc_s = ld("blk_wfc_s", BK, BK)               # I_B (x) (w_eff0 * Wfc^T)
    blk_wfc_t = ld("blk_wfc_t", BK, BK)               # I_B (x) (w_eff1 * Wfc^T)
    bias      = ld("bias", 1, BK)                     # folded decoder+fc bias

    # ---- temporal branch, all B windows at once in (T, B*feat) layout ----
    # per window: h -> relu(adj_t @ (h @ W)); block-diag W keeps windows apart.
    h = relu(mm(a_t, mm(x, blk_wt1)))                 # (T, BK) (cols >8B are 0)
    h = relu(mm(a_t, mm(h, blk_wt2)))                 # (T, BK) (cols >4B are 0)
    x_t = relu(mm(a_t, mm(h, blk_wt3)))               # (T, BK)

    # ---- spatial branch, evaluated fully transposed in (feat, B*K) layout ----
    # per window: relu(adj_s @ (h @ W))^T == relu((W^T @ h^T) @ adj_s^T)
    s = relu(mm(mm(w_s1_T, x), blk_as_T))             # (8, BK)
    s = relu(mm(mm(w_s2_T, s), blk_as_T))             # (4, BK)
    x_s_T = relu(mm(mm(w_s3_T, s), blk_as_T))         # (T, BK)  == x_s^T batched

    # ---- collapsed decoders (linear 2->8->4->1) folded into fc ----
    o_ref[...] = mm(x_s_T, blk_wfc_s) + mm(x_t, blk_wfc_t) + bias


def _fold_and_pack(x_adj_s, x_adj_t, p, T, K, B):
    """Host-side algebraic folding + packing into one lane-dense slab."""
    hp = lax.Precision.HIGHEST
    BK = B * K

    # Collapse decoder_1/2/3 (exact: pure 1x1 ConvTranspose2d, no activation
    # between them in MSST_GCN.forward).
    w_12 = jnp.matmul(p["w_d1"], p["w_d2"], precision=hp)             # (2, 4)
    w_eff = jnp.matmul(w_12, p["w_d3"], precision=hp)                 # (2, 1)
    b_12 = jnp.matmul(p["b_d1"], p["w_d2"], precision=hp) + p["b_d2"]
    b_eff = jnp.matmul(b_12, p["w_d3"], precision=hp) + p["b_d3"]     # (1,)

    # Absorb the decoder affine map into fc:
    #   y = x_s^T @ (w_eff0 * Wfc^T) + x_t @ (w_eff1 * Wfc^T) + b_all
    wfc_s = w_eff[0, 0] * p["w_fc"].T                                 # (K, K)
    wfc_t = w_eff[1, 0] * p["w_fc"].T                                 # (K, K)
    b_all = b_eff[0] * jnp.sum(p["w_fc"], axis=1)[None, :] + p["b_fc"]  # (1, K)

    eye_b = jnp.eye(B, dtype=jnp.float32)
    blk = lambda w: jnp.kron(eye_b, w.astype(jnp.float32))            # I_B (x) W

    def pad_to(m, r, c):
        return jnp.pad(m, ((0, r - m.shape[0]), (0, c - m.shape[1])))

    entries = [
        ("a_t",       x_adj_t),                                       # (T, T)
        ("blk_as_T",  blk(x_adj_s.T)),                                # (BK, BK)
        ("blk_wt1",   pad_to(blk(p["w_t1"]), BK, BK)),                # (BK, BK)
        ("blk_wt2",   pad_to(blk(p["w_t2"]), BK, BK)),                # (BK, BK)
        ("blk_wt3",   pad_to(blk(p["w_t3"]), BK, BK)),                # (BK, BK)
        ("w_s1_T",    p["w_s1"].T),                                   # (8, T)
        ("w_s2_T",    p["w_s2"].T),                                   # (4, 8)
        ("w_s3_T",    p["w_s3"].T),                                   # (T, 4)
        ("blk_wfc_s", blk(wfc_s)),                                    # (BK, BK)
        ("blk_wfc_t", blk(wfc_t)),                                    # (BK, BK)
        ("bias",      jnp.tile(b_all, (1, B))),                       # (1, BK)
    ]

    lane_w = -(-max(BK, T, 8) // 128) * 128       # slab lane width (mult of 128)
    off, rows, r0 = {}, [], 0
    for name, m in entries:
        m = m.astype(jnp.float32)
        rp = -(-m.shape[0] // 8) * 8              # sublane-align every entry
        rows.append(jnp.pad(m, ((0, rp - m.shape[0]), (0, lane_w - m.shape[1]))))
        off[name] = r0
        r0 += rp
    slab = jnp.concatenate(rows, axis=0)          # (rows, lane_w) f32
    return slab, off


def msst_gcn_forward(x, x_adj_s, x_adj_t, p):
    """x: (B, T, K) batch of independent windows; each window is exactly the
    PyTorch module's forward (B=1 reproduces it)."""
    B, T, K = x.shape
    assert K >= 8, "hidden width 8 must fit inside the per-window feature lanes"
    BK = B * K
    slab, off = _fold_and_pack(x_adj_s, x_adj_t, p, T, K, B)

    # lane-dense packing: x_packed[t, b*K + k] = x[b, t, k]
    x_packed = jnp.transpose(x, (1, 0, 2)).reshape(T, BK).astype(jnp.float32)

    kernel = functools.partial(_msst_gcn_kernel, off=off, T=T, K=K, B=B)
    y = pl.pallas_call(
        kernel,
        out_shape=jax.ShapeDtypeStruct((T, BK), jnp.float32),
        grid=(1,),                                # whole batch in one step
        in_specs=[
            pl.BlockSpec((T, BK), lambda i: (0, 0)),            # batched windows
            pl.BlockSpec(slab.shape, lambda i: (0, 0)),         # packed params
        ],
        out_specs=pl.BlockSpec((T, BK), lambda i: (0, 0)),      # one unmasked slab
        compiler_params=pltpu.CompilerParams(
            dimension_semantics=("arbitrary",)),
    )(x_packed, slab)

    return jnp.transpose(y.reshape(T, B, K), (1, 0, 2))         # back to (B, T, K)


def msst_gcn_reference(x, x_adj_s, x_adj_t, p):
    """Pure-JAX reference: un-folded decoders, HIGHEST-precision f32, vmapped."""
    hp = lax.Precision.HIGHEST

    def gcn(h, adj, w):
        return jax.nn.relu(jnp.dot(adj, jnp.dot(h, w, precision=hp), precision=hp))

    def single(xw):
        x_t = gcn(xw, x_adj_t, p["w_t1"])
        x_t = gcn(x_t, x_adj_t, p["w_t2"])
        x_t = gcn(x_t, x_adj_t, p["w_t3"])
        x_s = gcn(xw.T, x_adj_s, p["w_s1"])
        x_s = gcn(x_s, x_adj_s, p["w_s2"])
        x_s = gcn(x_s, x_adj_s, p["w_s3"])
        fusion = jnp.stack([x_s.T, x_t], axis=0)                      # (2, T, K)
        h = jnp.einsum("itk,io->otk", fusion, p["w_d1"], precision=hp) + p["b_d1"][:, None, None]
        h = jnp.einsum("itk,io->otk", h, p["w_d2"], precision=hp) + p["b_d2"][:, None, None]
        h = jnp.einsum("itk,io->otk", h, p["w_d3"], precision=hp) + p["b_d3"][:, None, None]
        dec = h[0]                                                    # (T, K)
        return jnp.dot(dec, p["w_fc"].T, precision=hp) + p["b_fc"][0]

    return jax.vmap(single)(x)


if __name__ == "__main__":
    # x_dim_s = T (time steps), x_dim_t = K (sensors), seq = 1, B windows.
    # B*K = 128 -> exactly one vreg lane width for the batched layout.
    B, T, K = 8, 8, 16

    key = jax.random.PRNGKey(0)
    ks = jax.random.split(key, 18)
    scale = 0.2

    x = jax.random.normal(ks[0], (B, T, K), jnp.float32)
    a_t = jax.random.uniform(ks[1], (T, T), jnp.float32)
    a_s = jax.random.uniform(ks[2], (K, K), jnp.float32)
    a_t = a_t / jnp.sum(a_t, axis=1, keepdims=True)   # deterministic row-normalized adjacency
    a_s = a_s / jnp.sum(a_s, axis=1, keepdims=True)

    params = {
        # GraphConvolution weights (input_dim, output_dim), bias=False
        "w_t1": scale * jax.random.normal(ks[3], (K, 8), jnp.float32),
        "w_t2": scale * jax.random.normal(ks[4], (8, 4), jnp.float32),
        "w_t3": scale * jax.random.normal(ks[5], (4, K), jnp.float32),
        "w_s1": scale * jax.random.normal(ks[6], (T, 8), jnp.float32),
        "w_s2": scale * jax.random.normal(ks[7], (8, 4), jnp.float32),
        "w_s3": scale * jax.random.normal(ks[8], (4, T), jnp.float32),
        # ConvTranspose2d 1x1 weights, stored as (in_channels, out_channels)
        "w_d1": scale * jax.random.normal(ks[9], (2, 8), jnp.float32),
        "b_d1": scale * jax.random.normal(ks[10], (8,), jnp.float32),
        "w_d2": scale * jax.random.normal(ks[11], (8, 4), jnp.float32),
        "b_d2": scale * jax.random.normal(ks[12], (4,), jnp.float32),
        "w_d3": scale * jax.random.normal(ks[13], (4, 1), jnp.float32),
        "b_d3": scale * jax.random.normal(ks[14], (1,), jnp.float32),
        # nn.Linear(x_dim_t, x_dim_t): weight (out, in), bias kept as (1, K)
        "w_fc": scale * jax.random.normal(ks[15], (K, K), jnp.float32),
        "b_fc": scale * jax.random.normal(ks[16], (1, K), jnp.float32),
    }

    fwd = jax.jit(msst_gcn_forward)
    out = fwd(x, a_s, a_t, params)
    out = jax.block_until_ready(out)

    ref = msst_gcn_reference(x, a_s, a_t, params)
    assert out.shape == (B, T, K)
    max_err = jnp.max(jnp.abs(out - ref))
    # kernel keeps activations and MXU operands in f32; reference is
    # HIGHEST-precision f32 -> tolerance comfortably covers MXU rounding.
    assert jnp.allclose(out, ref, rtol=1e-2, atol=2e-3), f"mismatch: max abs err {max_err}"

    print("KERNEL_OK")
</pallas_src>

<mosaic_0001>
module attributes {stable_mosaic.version = 11 : i64} {
  func.func @_msst_gcn_kernel(%arg0: i32, %arg1: memref<8x128xf32, #tpu.memory_space<vmem>>, %arg2: memref<808x128xf32, #tpu.memory_space<vmem>>, %arg3: memref<8x128xf32, #tpu.memory_space<vmem>>) attributes {dimension_semantics = [#tpu.dimension_semantics<arbitrary>], iteration_bounds = array<i64: 1>, scalar_prefetch = 0 : i64, scratch_operands = 0 : i64, tpu.core_type = #tpu.core_type<tc>, window_params = [{pipeline_mode = #tpu.pipeline_mode<synchronous>, transform_indices = @transform_0, window_bounds = array<i64: 8, 128>}, {pipeline_mode = #tpu.pipeline_mode<synchronous>, transform_indices = @transform_1, window_bounds = array<i64: 808, 128>}, {pipeline_mode = #tpu.pipeline_mode<synchronous>, transform_indices = @transform_2, window_bounds = array<i64: 8, 128>}]} {
    %c0 = arith.constant 0 : index
    %c0_0 = arith.constant 0 : index
    %0 = vector.load %arg1[%c0, %c0_0] : memref<8x128xf32, #tpu.memory_space<vmem>>, vector<8x128xf32>
    %c0_1 = arith.constant 0 : index
    %c0_2 = arith.constant 0 : index
    %1 = vector.load %arg2[%c0_1, %c0_2] : memref<808x128xf32, #tpu.memory_space<vmem>>, vector<8x8xf32>
    %c8 = arith.constant 8 : index
    %c0_3 = arith.constant 0 : index
    %2 = vector.load %arg2[%c8, %c0_3] : memref<808x128xf32, #tpu.memory_space<vmem>>, vector<128x128xf32>
    %c136 = arith.constant 136 : index
    %c0_4 = arith.constant 0 : index
    %3 = vector.load %arg2[%c136, %c0_4] : memref<808x128xf32, #tpu.memory_space<vmem>>, vector<128x128xf32>
    %c264 = arith.constant 264 : index
    %c0_5 = arith.constant 0 : index
    %4 = vector.load %arg2[%c264, %c0_5] : memref<808x128xf32, #tpu.memory_space<vmem>>, vector<128x128xf32>
    %c392 = arith.constant 392 : index
    %c0_6 = arith.constant 0 : index
    %5 = vector.load %arg2[%c392, %c0_6] : memref<808x128xf32, #tpu.memory_space<vmem>>, vector<128x128xf32>
    %c520 = arith.constant 520 : index
    %c0_7 = arith.constant 0 : index
    %6 = vector.load %arg2[%c520, %c0_7] : memref<808x128xf32, #tpu.memory_space<vmem>>, vector<8x8xf32>
    %c528 = arith.constant 528 : index
    %c0_8 = arith.constant 0 : index
    %7 = vector.load %arg2[%c528, %c0_8] : memref<808x128xf32, #tpu.memory_space<vmem>>, vector<4x8xf32>
    %c536 = arith.constant 536 : index
    %c0_9 = arith.constant 0 : index
    %8 = vector.load %arg2[%c536, %c0_9] : memref<808x128xf32, #tpu.memory_space<vmem>>, vector<8x4xf32>
    %c544 = arith.constant 544 : index
    %c0_10 = arith.constant 0 : index
    %9 = vector.load %arg2[%c544, %c0_10] : memref<808x128xf32, #tpu.memory_space<vmem>>, vector<128x128xf32>
    %c672 = arith.constant 672 : index
    %c0_11 = arith.constant 0 : index
    %10 = vector.load %arg2[%c672, %c0_11] : memref<808x128xf32, #tpu.memory_space<vmem>>, vector<128x128xf32>
    %c800 = arith.constant 800 : index
    %c0_12 = arith.constant 0 : index
    %11 = vector.load %arg2[%c800, %c0_12] : memref<808x128xf32, #tpu.memory_space<vmem>>, vector<1x128xf32>
    %cst = arith.constant dense<0.000000e+00> : vector<8x128xf32>
    %12 = tpu.matmul %0, %3, %cst {dimension_numbers = #tpu.dot_dimension_numbers<[1], [0], [0], [1], [0, 0, 1, 1], [], []>} : vector<8x128xf32>, vector<128x128xf32>, vector<8x128xf32> -> vector<8x128xf32>
    %cst_13 = arith.constant dense<0.000000e+00> : vector<8x128xf32>
    %13 = tpu.matmul %1, %12, %cst_13 {dimension_numbers = #tpu.dot_dimension_numbers<[1], [0], [0], [1], [0, 0, 1, 1], [], []>} : vector<8x8xf32>, vector<8x128xf32>, vector<8x128xf32> -> vector<8x128xf32>
    %cst_14 = arith.constant 0.000000e+00 : f32
    %14 = vector.broadcast %cst_14 : f32 to vector<8x128xf32>
    %15 = arith.maximumf %13, %14 : vector<8x128xf32>
    %cst_15 = arith.constant dense<0.000000e+00> : vector<8x128xf32>
    %16 = tpu.matmul %15, %4, %cst_15 {dimension_numbers = #tpu.dot_dimension_numbers<[1], [0], [0], [1], [0, 0, 1, 1], [], []>} : vector<8x128xf32>, vector<128x128xf32>, vector<8x128xf32> -> vector<8x128xf32>
    %cst_16 = arith.constant dense<0.000000e+00> : vector<8x128xf32>
    %17 = tpu.matmul %1, %16, %cst_16 {dimension_numbers = #tpu.dot_dimension_numbers<[1], [0], [0], [1], [0, 0, 1, 1], [], []>} : vector<8x8xf32>, vector<8x128xf32>, vector<8x128xf32> -> vector<8x128xf32>
    %cst_17 = arith.constant 0.000000e+00 : f32
    %18 = vector.broadcast %cst_17 : f32 to vector<8x128xf32>
    %19 = arith.maximumf %17, %18 : vector<8x128xf32>
    %cst_18 = arith.constant dense<0.000000e+00> : vector<8x128xf32>
    %20 = tpu.matmul %19, %5, %cst_18 {dimension_numbers = #tpu.dot_dimension_numbers<[1], [0], [0], [1], [0, 0, 1, 1], [], []>} : vector<8x128xf32>, vector<128x128xf32>, vector<8x128xf32> -> vector<8x128xf32>
    %cst_19 = arith.constant dense<0.000000e+00> : vector<8x128xf32>
    %21 = tpu.matmul %1, %20, %cst_19 {dimension_numbers = #tpu.dot_dimension_numbers<[1], [0], [0], [1], [0, 0, 1, 1], [], []>} : vector<8x8xf32>, vector<8x128xf32>, vector<8x128xf32> -> vector<8x128xf32>
    %cst_20 = arith.constant 0.000000e+00 : f32
    %22 = vector.broadcast %cst_20 : f32 to vector<8x128xf32>
    %23 = arith.maximumf %21, %22 : vector<8x128xf32>
    %cst_21 = arith.constant dense<0.000000e+00> : vector<8x128xf32>
    %24 = tpu.matmul %6, %0, %cst_21 {dimension_numbers = #tpu.dot_dimension_numbers<[1], [0], [0], [1], [0, 0, 1, 1], [], []>} : vector<8x8xf32>, vector<8x128xf32>, vector<8x128xf32> -> vector<8x128xf32>
    %cst_22 = arith.constant dense<0.000000e+00> : vector<8x128xf32>
    %25 = tpu.matmul %24, %2, %cst_22 {dimension_numbers = #tpu.dot_dimension_numbers<[1], [0], [0], [1], [0, 0, 1, 1], [], []>} : vector<8x128xf32>, vector<128x128xf32>, vector<8x128xf32> -> vector<8x128xf32>
    %cst_23 = arith.constant 0.000000e+00 : f32
    %26 = vector.broadcast %cst_23 : f32 to vector<8x128xf32>
    %27 = arith.maximumf %25, %26 : vector<8x128xf32>
    %cst_24 = arith.constant dense<0.000000e+00> : vector<4x128xf32>
    %28 = tpu.matmul %7, %27, %cst_24 {dimension_numbers = #tpu.dot_dimension_numbers<[1], [0], [0], [1], [0, 0, 1, 1], [], []>} : vector<4x8xf32>, vector<8x128xf32>, vector<4x128xf32> -> vector<4x128xf32>
    %cst_25 = arith.constant dense<0.000000e+00> : vector<4x128xf32>
    %29 = tpu.matmul %28, %2, %cst_25 {dimension_numbers = #tpu.dot_dimension_numbers<[1], [0], [0], [1], [0, 0, 1, 1], [], []>} : vector<4x128xf32>, vector<128x128xf32>, vector<4x128xf32> -> vector<4x128xf32>
    %cst_26 = arith.constant 0.000000e+00 : f32
    %30 = vector.broadcast %cst_26 : f32 to vector<4x128xf32>
    %31 = arith.maximumf %29, %30 : vector<4x128xf32>
    %cst_27 = arith.constant dense<0.000000e+00> : vector<8x128xf32>
    %32 = tpu.matmul %8, %31, %cst_27 {dimension_numbers = #tpu.dot_dimension_numbers<[1], [0], [0], [1], [0, 0, 1, 1], [], []>} : vector<8x4xf32>, vector<4x128xf32>, vector<8x128xf32> -> vector<8x128xf32>
    %cst_28 = arith.constant dense<0.000000e+00> : vector<8x128xf32>
    %33 = tpu.matmul %32, %2, %cst_28 {dimension_numbers = #tpu.dot_dimension_numbers<[1], [0], [0], [1], [0, 0, 1, 1], [], []>} : vector<8x128xf32>, vector<128x128xf32>, vector<8x128xf32> -> vector<8x128xf32>
    %cst_29 = arith.constant 0.000000e+00 : f32
    %34 = vector.broadcast %cst_29 : f32 to vector<8x128xf32>
    %35 = arith.maximumf %33, %34 : vector<8x128xf32>
    %cst_30 = arith.constant dense<0.000000e+00> : vector<8x128xf32>
    %36 = tpu.matmul %35, %9, %cst_30 {dimension_numbers = #tpu.dot_dimension_numbers<[1], [0], [0], [1], [0, 0, 1, 1], [], []>} : vector<8x128xf32>, vector<128x128xf32>, vector<8x128xf32> -> vector<8x128xf32>
    %cst_31 = arith.constant dense<0.000000e+00> : vector<8x128xf32>
    %37 = tpu.matmul %23, %10, %cst_31 {dimension_numbers = #tpu.dot_dimension_numbers<[1], [0], [0], [1], [0, 0, 1, 1], [], []>} : vector<8x128xf32>, vector<128x128xf32>, vector<8x128xf32> -> vector<8x128xf32>
    %38 = arith.addf %36, %37 : vector<8x128xf32>
    %39 = vector.broadcast %11 : vector<1x128xf32> to vector<8x128xf32>
    %40 = arith.addf %38, %39 : vector<8x128xf32>
    %c0_32 = arith.constant 0 : index
    %c0_33 = arith.constant 0 : index
    %41 = vector.load %arg3[%c0_32, %c0_33] : memref<8x128xf32, #tpu.memory_space<vmem>>, vector<8x128xf32>
    tpu.vector_store %arg3[%c0_32, %c0_33], %40 {strides = array<i32>} : memref<8x128xf32, #tpu.memory_space<vmem>>, vector<8x128xf32>,
    return
  }
  func.func @transform_0(%arg0: i32) -> (i32, i32) {
    %c0_i32 = arith.constant 0 : i32
    %c0_i32_0 = arith.constant 0 : i32
    %c0_i32_1 = arith.constant 0 : i32
    return %c0_i32, %c0_i32_0 : i32, i32
  }
  func.func @transform_1(%arg0: i32) -> (i32, i32) {
    %c0_i32 = arith.constant 0 : i32
    %c0_i32_0 = arith.constant 0 : i32
    %c0_i32_1 = arith.constant 0 : i32
    return %c0_i32, %c0_i32_0 : i32, i32
  }
  func.func @transform_2(%arg0: i32) -> (i32, i32) {
    %c0_i32 = arith.constant 0 : i32
    %c0_i32_0 = arith.constant 0 : i32
    %c0_i32_1 = arith.constant 0 : i32
    return %c0_i32, %c0_i32_0 : i32, i32
  }
}

</mosaic_0001>

<llo_original>
// kernel: msst_gcn_forward.1
$region0: #{msst_gcn_forward.1}
  #allocation0 [shape = 'u32[]', space=smem, size = 0x4, offset = 0x4, fixed_abs, tag = 'smem constant byte address 0x4 - core index']
  #allocation1 [shape = 'u32[72,128]{1,0:T(1,128)}', space=vmem, size = 0x9000, scoped, tag = 'internal scratch']
  %s0 = inlined_call_operand.vmem [shape: f32[8,128], index: 0, kind: input, shape index: {}]
  %s1 = inlined_call_operand.vmem [shape: f32[808,128], index: 1, kind: input, shape index: {}]
  %s2 = inlined_call_operand.vmem [shape: f32[8,128], index: 2, kind: output, shape index: {}]
  %s3 = sld [smem:[#allocation0]]
  $region18: #{msst_gcn_forward.1} parent=0
    _
  %s5 = ssub.s32 1, %s3
  %s6 = scalar_select 0, %s5, %s3
  // Predicated region
  $region2: #{msst_gcn_forward.1} parent=0 // pred_check
    _
  $region3: #{msst_gcn_forward.1} parent=0 // pred_check_branch
    %8 = sbr.rel (0) target = $region5
  $region4: #{msst_gcn_forward.1} parent=0 // pred_region
    _
  $region5: #{msst_gcn_forward.1} parent=0 // pred_fallthru
    _
  // Predicated region
  $region6: #{msst_gcn_forward.1} parent=0 // pred_check
    _
  $region7: #{msst_gcn_forward.1} parent=0 // pred_check_branch
    %10 = sbr.rel (0) target = $region9
  $region8: #{msst_gcn_forward.1} parent=0 // pred_region
    _
  $region9: #{msst_gcn_forward.1} parent=0 // pred_fallthru
    _
  %v11 = vld [vmem:[%s0] sm:$0xff]
  %v12 = vld [vmem:[%s1] sm:$0xff]
  %v13 = vld [vmem:[%s1 + $0x8] sm:$0xff]
  %v14 = vld [vmem:[%s1 + $0x10] sm:$0xff]
  %v15 = vld [vmem:[%s1 + $0x18] sm:$0xff]
  %v16 = vld [vmem:[%s1 + $0x20] sm:$0xff]
  %v17 = vld [vmem:[%s1 + $0x28] sm:$0xff]
  %v18 = vld [vmem:[%s1 + $0x30] sm:$0xff]
  %v19 = vld [vmem:[%s1 + $0x38] sm:$0xff]
  %v20 = vld [vmem:[%s1 + $0x40] sm:$0xff]
  %v21 = vld [vmem:[%s1 + $0x48] sm:$0xff]
  %v22 = vld [vmem:[%s1 + $0x50] sm:$0xff]
  %v23 = vld [vmem:[%s1 + $0x58] sm:$0xff]
  %v24 = vld [vmem:[%s1 + $0x60] sm:$0xff]
  %v25 = vld [vmem:[%s1 + $0x68] sm:$0xff]
  %v26 = vld [vmem:[%s1 + $0x70] sm:$0xff]
  %v27 = vld [vmem:[%s1 + $0x78] sm:$0xff]
  %v28 = vld [vmem:[%s1 + $0x80] sm:$0xff]
  %v29 = vld [vmem:[%s1 + $0x88] sm:$0xff]
  %v30 = vld [vmem:[%s1 + $0x90] sm:$0xff]
  %v31 = vld [vmem:[%s1 + $0x98] sm:$0xff]
  %v32 = vld [vmem:[%s1 + $0xa0] sm:$0xff]
  %v33 = vld [vmem:[%s1 + $0xa8] sm:$0xff]
  %v34 = vld [vmem:[%s1 + $0xb0] sm:$0xff]
  %v35 = vld [vmem:[%s1 + $0xb8] sm:$0xff]
  %v36 = vld [vmem:[%s1 + $0xc0] sm:$0xff]
  %v37 = vld [vmem:[%s1 + $0xc8] sm:$0xff]
  %v38 = vld [vmem:[%s1 + $0xd0] sm:$0xff]
  %v39 = vld [vmem:[%s1 + $0xd8] sm:$0xff]
  %v40 = vld [vmem:[%s1 + $0xe0] sm:$0xff]
  %v41 = vld [vmem:[%s1 + $0xe8] sm:$0xff]
  %v42 = vld [vmem:[%s1 + $0xf0] sm:$0xff]
  %v43 = vld [vmem:[%s1 + $0xf8] sm:$0xff]
  %v44 = vld [vmem:[%s1 + $0x100] sm:$0xff]
  %v45 = vld [vmem:[%s1 + $0x108] sm:$0xff]
  %v46 = vld [vmem:[%s1 + $0x110] sm:$0xff]
  %v47 = vld [vmem:[%s1 + $0x118] sm:$0xff]
  %v48 = vld [vmem:[%s1 + $0x120] sm:$0xff]
  %v49 = vld [vmem:[%s1 + $0x128] sm:$0xff]
  %v50 = vld [vmem:[%s1 + $0x130] sm:$0xff]
  %v51 = vld [vmem:[%s1 + $0x138] sm:$0xff]
  %v52 = vld [vmem:[%s1 + $0x140] sm:$0xff]
  %v53 = vld [vmem:[%s1 + $0x148] sm:$0xff]
  %v54 = vld [vmem:[%s1 + $0x150] sm:$0xff]
  %v55 = vld [vmem:[%s1 + $0x158] sm:$0xff]
  %v56 = vld [vmem:[%s1 + $0x160] sm:$0xff]
  %v57 = vld [vmem:[%s1 + $0x168] sm:$0xff]
  %v58 = vld [vmem:[%s1 + $0x170] sm:$0xff]
  %v59 = vld [vmem:[%s1 + $0x178] sm:$0xff]
  %v60 = vld [vmem:[%s1 + $0x180] sm:$0xff]
  %v61 = vld [vmem:[%s1 + $0x188] sm:$0xff]
  %v62 = vld [vmem:[%s1 + $0x190] sm:$0xff]
  %v63 = vld [vmem:[%s1 + $0x198] sm:$0xff]
  %v64 = vld [vmem:[%s1 + $0x1a0] sm:$0xff]
  %v65 = vld [vmem:[%s1 + $0x1a8] sm:$0xff]
  %v66 = vld [vmem:[%s1 + $0x1b0] sm:$0xff]
  %v67 = vld [vmem:[%s1 + $0x1b8] sm:$0xff]
  %v68 = vld [vmem:[%s1 + $0x1c0] sm:$0xff]
  %v69 = vld [vmem:[%s1 + $0x1c8] sm:$0xff]
  %v70 = vld [vmem:[%s1 + $0x1d0] sm:$0xff]
  %v71 = vld [vmem:[%s1 + $0x1d8] sm:$0xff]
  %v72 = vld [vmem:[%s1 + $0x1e0] sm:$0xff]
  %v73 = vld [vmem:[%s1 + $0x1e8] sm:$0xff]
  %v74 = vld [vmem:[%s1 + $0x1f0] sm:$0xff]
  %v75 = vld [vmem:[%s1 + $0x1f8] sm:$0xff]
  %v76 = vld [vmem:[%s1 + $0x200] sm:$0xff]
  %v77 = vld [vmem:[%s1 + $0x208] sm:$0xff]
  %v78 = vld [vmem:[%s1 + $0x210] sm:$0xf]
  %v79 = vld [vmem:[%s1 + $0x218] sm:$0xff]
  %v80 = vld [vmem:[%s1 + $0x220] sm:$0xff]
  %v81 = vld [vmem:[%s1 + $0x228] sm:$0xff]
  %v82 = vld [vmem:[%s1 + $0x230] sm:$0xff]
  %v83 = vld [vmem:[%s1 + $0x238] sm:$0xff]
  %v84 = vld [vmem:[%s1 + $0x240] sm:$0xff]
  %v85 = vld [vmem:[%s1 + $0x248] sm:$0xff]
  %v86 = vld [vmem:[%s1 + $0x250] sm:$0xff]
  %v87 = vld [vmem:[%s1 + $0x258] sm:$0xff]
  %v88 = vld [vmem:[%s1 + $0x260] sm:$0xff]
  %v89 = vld [vmem:[%s1 + $0x268] sm:$0xff]
  %v90 = vld [vmem:[%s1 + $0x270] sm:$0xff]
  %v91 = vld [vmem:[%s1 + $0x278] sm:$0xff]
  %v92 = vld [vmem:[%s1 + $0x280] sm:$0xff]
  %v93 = vld [vmem:[%s1 + $0x288] sm:$0xff]
  %v94 = vld [vmem:[%s1 + $0x290] sm:$0xff]
  %v95 = vld [vmem:[%s1 + $0x298] sm:$0xff]
  %v96 = vld [vmem:[%s1 + $0x2a0] sm:$0xff]
  %v97 = vld [vmem:[%s1 + $0x2a8] sm:$0xff]
  %v98 = vld [vmem:[%s1 + $0x2b0] sm:$0xff]
  %v99 = vld [vmem:[%s1 + $0x2b8] sm:$0xff]
  %v100 = vld [vmem:[%s1 + $0x2c0] sm:$0xff]
  %v101 = vld [vmem:[%s1 + $0x2c8] sm:$0xff]
  %v102 = vld [vmem:[%s1 + $0x2d0] sm:$0xff]
  %v103 = vld [vmem:[%s1 + $0x2d8] sm:$0xff]
  %v104 = vld [vmem:[%s1 + $0x2e0] sm:$0xff]
  %v105 = vld [vmem:[%s1 + $0x2e8] sm:$0xff]
  %v106 = vld [vmem:[%s1 + $0x2f0] sm:$0xff]
  %v107 = vld [vmem:[%s1 + $0x2f8] sm:$0xff]
  %v108 = vld [vmem:[%s1 + $0x300] sm:$0xff]
  %v109 = vld [vmem:[%s1 + $0x308] sm:$0xff]
  %v110 = vld [vmem:[%s1 + $0x310] sm:$0xff]
  %v111 = vld [vmem:[%s1 + $0x318] sm:$0xff]
  %v112 = vld [vmem:[%s1 + $0x320] sm:$0x1]
  %113 = vmatpush.msra.mxu0 %v44
  %114 = vmatpush.msra.mxu0 %v43
  %115 = vmatpush.msra.mxu0 %v42
  %116 = vmatpush.msra.mxu0 %v41
  %117 = vmatpush.msra.mxu0 %v40
  %118 = vmatpush.msra.mxu0 %v39
  %119 = vmatpush.msra.mxu0 %v38
  %120 = vmatpush.msra.mxu0 %v37
  %121 = vmatpush.msra.mxu0 %v36
  %122 = vmatpush.msra.mxu0 %v35
  %123 = vmatpush.msra.mxu0 %v34
  %124 = vmatpush.msra.mxu0 %v33
  %125 = vmatpush.msra.mxu0 %v32
  %126 = vmatpush.msra.mxu0 %v31
  %127 = vmatpush.msra.mxu0 %v30
  %128 = vmatpush.msra.mxu0 %v29
  %129 = vmatmul.f32.gmra.mxu0 %v11
  %v130 = vpop.f32.mrf.mxu0
  %v131 = vadd.f32 0.0, %v130
  %132 = vdwg.mxu0
  %vm133 = vcmask 64512
  %v135 = vsel %vm133, %v12, 0
  %137 = vmatpush.msra.mxu0 0.0
  %138 = vmatpush.msra.mxu0 0.0
  %139 = vmatpush.msra.mxu0 0.0
  %140 = vmatpush.msra.mxu0 0.0
  %141 = vmatpush.msra.mxu0 0.0
  %142 = vmatpush.msra.mxu0 0.0
  %143 = vmatpush.msra.mxu0 0.0
  %144 = vmatpush.msra.mxu0 0.0
  %145 = vmatpush.msra.mxu0 0.0
  %146 = vmatpush.msra.mxu0 0.0
  %147 = vmatpush.msra.mxu0 0.0
  %148 = vmatpush.msra.mxu0 0.0
  %149 = vmatpush.msra.mxu0 0.0
  %150 = vmatpush.msra.mxu0 0.0
  %151 = vmatpush.msra.mxu0 0.0
  %152 = vmatpush.msra.mxu0 %v131
  %153 = vmatmul.f32.gmra.mxu0 %v135
  %v154 = vpop.f32.mrf.mxu0
  %v155 = vadd.f32 0.0, %v154
  %156 = vdwg.mxu0
  %v157 = vmax.f32 %v155, 0.0
  %158 = vmatpush.msra.mxu0 %v60
  %159 = vmatpush.msra.mxu0 %v59
  %160 = vmatpush.msra.mxu0 %v58
  %161 = vmatpush.msra.mxu0 %v57
  %162 = vmatpush.msra.mxu0 %v56
  %163 = vmatpush.msra.mxu0 %v55
  %164 = vmatpush.msra.mxu0 %v54
  %165 = vmatpush.msra.mxu0 %v53
  %166 = vmatpush.msra.mxu0 %v52
  %167 = vmatpush.msra.mxu0 %v51
  %168 = vmatpush.msra.mxu0 %v50
  %169 = vmatpush.msra.mxu0 %v49
  %170 = vmatpush.msra.mxu0 %v48
  %171 = vmatpush.msra.mxu0 %v47
  %172 = vmatpush.msra.mxu0 %v46
  %173 = vmatpush.msra.mxu0 %v45
  %174 = vmatmul.f32.gmra.mxu0 %v157
  %v175 = vpop.f32.mrf.mxu0
  %v176 = vadd.f32 0.0, %v175
  %177 = vdwg.mxu0
  %178 = vmatpush.msra.mxu0 0.0
  %179 = vmatpush.msra.mxu0 0.0
  %180 = vmatpush.msra.mxu0 0.0
  %181 = vmatpush.msra.mxu0 0.0
  %182 = vmatpush.msra.mxu0 0.0
  %183 = vmatpush.msra.mxu0 0.0
  %184 = vmatpush.msra.mxu0 0.0
  %185 = vmatpush.msra.mxu0 0.0
  %186 = vmatpush.msra.mxu0 0.0
  %187 = vmatpush.msra.mxu0 0.0
  %188 = vmatpush.msra.mxu0 0.0
  %189 = vmatpush.msra.mxu0 0.0
  %190 = vmatpush.msra.mxu0 0.0
  %191 = vmatpush.msra.mxu0 0.0
  %192 = vmatpush.msra.mxu0 0.0
  %193 = vmatpush.msra.mxu0 %v176
  %194 = vmatmul.f32.gmra.mxu0 %v135
  %v195 = vpop.f32.mrf.mxu0
  %v196 = vadd.f32 0.0, %v195
  %197 = vdwg.mxu0
  %v198 = vmax.f32 %v196, 0.0
  %199 = vmatpush.msra.mxu0 %v76
  %200 = vmatpush.msra.mxu0 %v75
  %201 = vmatpush.msra.mxu0 %v74
  %202 = vmatpush.msra.mxu0 %v73
  %203 = vmatpush.msra.mxu0 %v72
  %204 = vmatpush.msra.mxu0 %v71
  %205 = vmatpush.msra.mxu0 %v70
  %206 = vmatpush.msra.mxu0 %v69
  %207 = vmatpush.msra.mxu0 %v68
  %208 = vmatpush.msra.mxu0 %v67
  %209 = vmatpush.msra.mxu0 %v66
  %210 = vmatpush.msra.mxu0 %v65
  %211 = vmatpush.msra.mxu0 %v64
  %212 = vmatpush.msra.mxu0 %v63
  %213 = vmatpush.msra.mxu0 %v62
  %214 = vmatpush.msra.mxu0 %v61
  %215 = vmatmul.f32.gmra.mxu0 %v198
  %v216 = vpop.f32.mrf.mxu0
  %v217 = vadd.f32 0.0, %v216
  %218 = vdwg.mxu0
  %219 = vmatpush.msra.mxu0 0.0
  %220 = vmatpush.msra.mxu0 0.0
  %221 = vmatpush.msra.mxu0 0.0
  %222 = vmatpush.msra.mxu0 0.0
  %223 = vmatpush.msra.mxu0 0.0
  %224 = vmatpush.msra.mxu0 0.0
  %225 = vmatpush.msra.mxu0 0.0
  %226 = vmatpush.msra.mxu0 0.0
  %227 = vmatpush.msra.mxu0 0.0
  %228 = vmatpush.msra.mxu0 0.0
  %229 = vmatpush.msra.mxu0 0.0
  %230 = vmatpush.msra.mxu0 0.0
  %231 = vmatpush.msra.mxu0 0.0
  %232 = vmatpush.msra.mxu0 0.0
  %233 = vmatpush.msra.mxu0 0.0
  %234 = vmatpush.msra.mxu0 %v217
  %235 = vmatmul.f32.gmra.mxu0 %v135
  %v236 = vpop.f32.mrf.mxu0
  %v237 = vadd.f32 0.0, %v236
  %238 = vdwg.mxu0
  %v239 = vmax.f32 %v237, 0.0
  %v241 = vsel %vm133, %v77, 0
  %243 = vmatpush.msra.mxu0 0.0
  %244 = vmatpush.msra.mxu0 0.0
  %245 = vmatpush.msra.mxu0 0.0
  %246 = vmatpush.msra.mxu0 0.0
  %247 = vmatpush.msra.mxu0 0.0
  %248 = vmatpush.msra.mxu0 0.0
  %249 = vmatpush.msra.mxu0 0.0
  %250 = vmatpush.msra.mxu0 0.0
  %251 = vmatpush.msra.mxu0 0.0
  %252 = vmatpush.msra.mxu0 0.0
  %253 = vmatpush.msra.mxu0 0.0
  %254 = vmatpush.msra.mxu0 0.0
  %255 = vmatpush.msra.mxu0 0.0
  %256 = vmatpush.msra.mxu0 0.0
  %257 = vmatpush.msra.mxu0 0.0
  %258 = vmatpush.msra.mxu0 %v11
  %259 = vmatmul.f32.gmra.mxu0 %v241
  %v260 = vpop.f32.mrf.mxu0
  %v261 = vadd.f32 0.0, %v260
  %262 = vdwg.mxu0
  %263 = vmatpush.msra.mxu0 %v28
  %264 = vmatpush.msra.mxu0 %v27
  %265 = vmatpush.msra.mxu0 %v26
  %266 = vmatpush.msra.mxu0 %v25
  %267 = vmatpush.msra.mxu0 %v24
  %268 = vmatpush.msra.mxu0 %v23
  %269 = vmatpush.msra.mxu0 %v22
  %270 = vmatpush.msra.mxu0 %v21
  %271 = vmatpush.msra.mxu0 %v20
  %272 = vmatpush.msra.mxu0 %v19
  %273 = vmatpush.msra.mxu0 %v18
  %274 = vmatpush.msra.mxu0 %v17
  %275 = vmatpush.msra.mxu0 %v16
  %276 = vmatpush.msra.mxu0 %v15
  %277 = vmatpush.msra.mxu0 %v14
  %278 = vmatpush.msra.mxu0 %v13
  %279 = vmatmul.f32.gmra.mxu0 %v261
  %v280 = vpop.f32.mrf.mxu0
  %v281 = vadd.f32 0.0, %v280
  %282 = vdwg.mxu0
  %v283 = vmax.f32 %v281, 0.0
  %v285 = vsel %vm133, %v78, 0
  %287 = vmatpush.msra.mxu0 0.0
  %288 = vmatpush.msra.mxu0 0.0
  %289 = vmatpush.msra.mxu0 0.0
  %290 = vmatpush.msra.mxu0 0.0
  %291 = vmatpush.msra.mxu0 0.0
  %292 = vmatpush.msra.mxu0 0.0
  %293 = vmatpush.msra.mxu0 0.0
  %294 = vmatpush.msra.mxu0 0.0
  %295 = vmatpush.msra.mxu0 0.0
  %296 = vmatpush.msra.mxu0 0.0
  %297 = vmatpush.msra.mxu0 0.0
  %298 = vmatpush.msra.mxu0 0.0
  %299 = vmatpush.msra.mxu0 0.0
  %300 = vmatpush.msra.mxu0 0.0
  %301 = vmatpush.msra.mxu0 0.0
  %302 = vmatpush.msra.mxu0 %v283
  %303 = vmatmul.f32.gmra.mxu0 %v285
  %v304 = vpop.f32.mrf.mxu0
  %v305 = vadd.f32 0.0, %v304
  %306 = vdwg.mxu0
  %307 = vmatpush.msra.mxu0 %v28
  %308 = vmatpush.msra.mxu0 %v27
  %309 = vmatpush.msra.mxu0 %v26
  %310 = vmatpush.msra.mxu0 %v25
  %311 = vmatpush.msra.mxu0 %v24
  %312 = vmatpush.msra.mxu0 %v23
  %313 = vmatpush.msra.mxu0 %v22
  %314 = vmatpush.msra.mxu0 %v21
  %315 = vmatpush.msra.mxu0 %v20
  %316 = vmatpush.msra.mxu0 %v19
  %317 = vmatpush.msra.mxu0 %v18
  %318 = vmatpush.msra.mxu0 %v17
  %319 = vmatpush.msra.mxu0 %v16
  %320 = vmatpush.msra.mxu0 %v15
  %321 = vmatpush.msra.mxu0 %v14
  %322 = vmatpush.msra.mxu0 %v13
  %323 = vmatmul.f32.gmra.mxu0 %v305
  %v324 = vpop.f32.mrf.mxu0
  %v325 = vadd.f32 0.0, %v324
  %326 = vdwg.mxu0
  %v327 = vmax.f32 %v325, 0.0
  %vm328 = vcmask 31744
  %v330 = vsel %vm328, %v79, 0
  %vm332 = vcmask 1043456
  %v334 = vsel %vm332, %v327, 0
  %336 = vmatpush.msra.mxu0 0.0
  %337 = vmatpush.msra.mxu0 0.0
  %338 = vmatpush.msra.mxu0 0.0
  %339 = vmatpush.msra.mxu0 0.0
  %340 = vmatpush.msra.mxu0 0.0
  %341 = vmatpush.msra.mxu0 0.0
  %342 = vmatpush.msra.mxu0 0.0
  %343 = vmatpush.msra.mxu0 0.0
  %344 = vmatpush.msra.mxu0 0.0
  %345 = vmatpush.msra.mxu0 0.0
  %346 = vmatpush.msra.mxu0 0.0
  %347 = vmatpush.msra.mxu0 0.0
  %348 = vmatpush.msra.mxu0 0.0
  %349 = vmatpush.msra.mxu0 0.0
  %350 = vmatpush.msra.mxu0 0.0
  %351 = vmatpush.msra.mxu0 %v334
  %352 = vmatmul.f32.gmra.mxu0 %v330
  %v353 = vpop.f32.mrf.mxu0
  %v354 = vadd.f32 0.0, %v353
  %355 = vdwg.mxu0
  %356 = vmatpush.msra.mxu0 %v28
  %357 = vmatpush.msra.mxu0 %v27
  %358 = vmatpush.msra.mxu0 %v26
  %359 = vmatpush.msra.mxu0 %v25
  %360 = vmatpush.msra.mxu0 %v24
  %361 = vmatpush.msra.mxu0 %v23
  %362 = vmatpush.msra.mxu0 %v22
  %363 = vmatpush.msra.mxu0 %v21
  %364 = vmatpush.msra.mxu0 %v20
  %365 = vmatpush.msra.mxu0 %v19
  %366 = vmatpush.msra.mxu0 %v18
  %367 = vmatpush.msra.mxu0 %v17
  %368 = vmatpush.msra.mxu0 %v16
  %369 = vmatpush.msra.mxu0 %v15
  %370 = vmatpush.msra.mxu0 %v14
  %371 = vmatpush.msra.mxu0 %v13
  %372 = vmatmul.f32.gmra.mxu0 %v354
  %v373 = vpop.f32.mrf.mxu0
  %v374 = vadd.f32 0.0, %v373
  %375 = vdwg.mxu0
  %v376 = vmax.f32 %v374, 0.0
  %377 = vmatpush.msra.mxu0 %v111
  %378 = vmatpush.msra.mxu0 %v110
  %379 = vmatpush.msra.mxu0 %v109
  %380 = vmatpush.msra.mxu0 %v108
  %381 = vmatpush.msra.mxu0 %v107
  %382 = vmatpush.msra.mxu0 %v106
  %383 = vmatpush.msra.mxu0 %v105
  %384 = vmatpush.msra.mxu0 %v104
  %385 = vmatpush.msra.mxu0 %v103
  %386 = vmatpush.msra.mxu0 %v102
  %387 = vmatpush.msra.mxu0 %v101
  %388 = vmatpush.msra.mxu0 %v100
  %389 = vmatpush.msra.mxu0 %v99
  %390 = vmatpush.msra.mxu0 %v98
  %391 = vmatpush.msra.mxu0 %v97
  %392 = vmatpush.msra.mxu0 %v96
  %393 = vmatmul.f32.gmra.mxu0 %v239
  %v394 = vpop.f32.mrf.mxu0
  %v395 = vadd.f32 0.0, %v394
  %396 = vdwg.mxu0
  %397 = vmatpush.msra.mxu0 %v95
  %398 = vmatpush.msra.mxu0 %v94
  %399 = vmatpush.msra.mxu0 %v93
  %400 = vmatpush.msra.mxu0 %v92
  %401 = vmatpush.msra.mxu0 %v91
  %402 = vmatpush.msra.mxu0 %v90
  %403 = vmatpush.msra.mxu0 %v89
  %404 = vmatpush.msra.mxu0 %v88
  %405 = vmatpush.msra.mxu0 %v87
  %406 = vmatpush.msra.mxu0 %v86
  %407 = vmatpush.msra.mxu0 %v85
  %408 = vmatpush.msra.mxu0 %v84
  %409 = vmatpush.msra.mxu0 %v83
  %410 = vmatpush.msra.mxu0 %v82
  %411 = vmatpush.msra.mxu0 %v81
  %412 = vmatpush.msra.mxu0 %v80
  %413 = vmatmul.f32.gmra.mxu0 %v376
  %v414 = vpop.f32.mrf.mxu0
  %v415 = vadd.f32 %v395, %v414
  %416 = vdwg.mxu0
  %v417 = vperm.slane %v112, 0
  %v418 = vadd.f32 %v415, %v417
  %419 = vst [vmem:[%s2] sm:$0xff] %v418
  // Predicated region
  $region10: #{msst_gcn_forward.1} parent=0 // pred_check
    _
  $region11: #{msst_gcn_forward.1} parent=0 // pred_check_branch
    %421 = sbr.rel (0) target = $region13
  $region12: #{msst_gcn_forward.1} parent=0 // pred_region
    _
  $region13: #{msst_gcn_forward.1} parent=0 // pred_fallthru
    _
  // Predicated region
  $region14: #{msst_gcn_forward.1} parent=0 // pred_check
    _
  $region15: #{msst_gcn_forward.1} parent=0 // pred_check_branch
    %423 = sbr.rel (0) target = $region17
  $region16: #{msst_gcn_forward.1} parent=0 // pred_region
    _
  $region17: #{msst_gcn_forward.1} parent=0 // pred_fallthru
    _

</llo_original>
